<compile_context>
chip_gen: v5e
topology: v5e:2x2
jax: 0.10.0
libtpu: 0.0.40
codegen_flags: <defaults>
</compile_context>

<pallas_src>
import functools

import jax
import jax.numpy as jnp
from jax.experimental import pallas as pl
from jax.experimental.pallas import tpu as pltpu


def _round_up(x, m):
    return ((x + m - 1) // m) * m


def _phys_rows(b, dtype):
    """Rows a (b, tk) block physically occupies in VMEM (sublane packing)."""
    isz = jnp.dtype(dtype).itemsize
    pack = 8 * max(1, 4 // isz)        # f32 -> 8, bf16 -> 16, int8 -> 32
    return _round_up(b, pack)


def _num_tensorcores():
    """2 for chips exposing two TensorCores behind one device, else 1."""
    try:
        kind = jax.devices()[0].device_kind.lower()
    except Exception:
        return 1
    # Single-TC-per-device chips.
    if any(s in kind for s in ("v5e", "v5 lite", "v5lite", "v6e", "v6 lite",
                               "v2", "v3")):
        return 1
    # Megacore / dual-TC chips (v4, v5p, v7x).
    if any(s in kind for s in ("v4", "v5p", "v5", "v7", "7x", "tpu7")):
        return 2
    return 1


def _vmem_capacity_bytes():
    try:
        info = pltpu.get_tpu_info()
        cap = int(getattr(info, "vmem_capacity_bytes", 0) or 0)
        if cap > 0:
            return cap
    except Exception:
        pass
    return 64 * 1024 * 1024            # conservative: v7x per-TC VMEM


def _diff_loss_kernel(d1_ref, d2_ref, g12_ref, g11_ref, g22_ref,
                      g12_acc, g11_acc, g22_acc,
                      *, k_total, tk, kk_per_split, kb_total,
                      needs_mask, has_phantom):
    c = pl.program_id(0)               # K-split (TensorCore) index
    kk = pl.program_id(1)              # K block index within the split
    global_kk = c * kk_per_split + kk

    @pl.when(kk == 0)
    def _init():
        g12_acc[...] = jnp.zeros_like(g12_acc)
        g11_acc[...] = jnp.zeros_like(g11_acc)
        g22_acc[...] = jnp.zeros_like(g22_acc)

    d1 = d1_ref[...]                   # (B, tk), native dtype (f32 or bf16)
    d2 = d2_ref[...]                   # (B, tk)

    def accumulate(a, b):
        dims = (((1,), (1,)), ((), ()))
        # All three Gram accumulations ride the (otherwise idle) MXU with f32
        # accumulation; diagonals of g11/g22 give the row sums-of-squares.
        g12_acc[...] += jax.lax.dot_general(
            a, b, dims, preferred_element_type=jnp.float32)
        g11_acc[...] += jax.lax.dot_general(
            a, a, dims, preferred_element_type=jnp.float32)
        g22_acc[...] += jax.lax.dot_general(
            b, b, dims, preferred_element_type=jnp.float32)

    last_real = kb_total - 1
    if needs_mask or has_phantom:
        # Fully in-bounds blocks: no mask work at all.
        full_pred = (global_kk < last_real) if needs_mask else (
            global_kk <= last_real)

        @pl.when(full_pred)
        def _full():
            accumulate(d1, d2)

        if needs_mask:
            # Only the final real K block pays for the ragged-tail mask.
            @pl.when(global_kk == last_real)
            def _tail():
                col = last_real * tk + jax.lax.broadcasted_iota(
                    jnp.int32, (1, tk), 1)
                valid = col < k_total
                d1m = jnp.where(valid, d1, jnp.zeros((), d1.dtype))
                d2m = jnp.where(valid, d2, jnp.zeros((), d2.dtype))
                accumulate(d1m, d2m)
        # Phantom blocks (global_kk > last_real, from an uneven dual-TC
        # split) contribute nothing.
    else:
        accumulate(d1, d2)

    @pl.when(kk == pl.num_programs(1) - 1)
    def _finalize():
        g12_ref[0, :, :] = g12_acc[...]
        g11_ref[0, :, :] = g11_acc[...]
        g22_ref[0, :, :] = g22_acc[...]


def diff_loss(d1, d2, *, tk=None, n_splits=None):
    """Pallas implementation of DiffLoss.forward(D1, D2) -> scalar f32."""
    b = d1.shape[0]
    assert d2.shape[0] == b, "batch dims must match"
    d1f = d1.reshape(b, -1)
    d2f = d2.reshape(b, -1)
    k = d1f.shape[1]
    assert d2f.shape[1] == k, "flattened feature dims must match for mm"

    isz1 = jnp.dtype(d1f.dtype).itemsize
    isz2 = jnp.dtype(d2f.dtype).itemsize

    vmem_cap = _vmem_capacity_bytes()
    # ~3/8 of VMEM for the two double-buffered input streams:
    # ~24 MiB on v7x (64 MiB/TC), ~48 MiB on v5e/v6e (128 MiB).
    input_budget = (vmem_cap * 3) // 8

    splits = int(n_splits) if n_splits is not None else _num_tensorcores()
    splits = max(1, splits)

    k_pad = _round_up(k, 128)
    bytes_per_col = (_phys_rows(b, d1f.dtype) * isz1
                     + _phys_rows(b, d2f.dtype) * isz2)
    if tk is None:
        # 2 pipeline buffers per input; blocks accounted at physical
        # (sublane-padded) size.  No artificial cap: the mem-bound kernel
        # wants the biggest tiles that fit.
        tk = input_budget // (2 * bytes_per_col)
    tk = max(128, (int(tk) // 128) * 128)      # lane-aligned
    tk = min(tk, k_pad)                        # never bigger than (padded) K
    if splits > 1:
        # Make sure each TensorCore gets at least one K block to stream.
        tk = min(tk, _round_up(pl.cdiv(k, splits), 128))

    kb_total = pl.cdiv(k, tk)                  # number of real K blocks
    splits = min(splits, kb_total)
    kk_per_split = pl.cdiv(kb_total, splits)
    has_phantom = splits * kk_per_split > kb_total
    needs_mask = kb_total * tk != k

    kernel = functools.partial(
        _diff_loss_kernel,
        k_total=k, tk=tk, kk_per_split=kk_per_split, kb_total=kb_total,
        needs_mask=needs_mask, has_phantom=has_phantom)

    if has_phantom:
        def in_idx(c, kk):
            # Clamp phantom blocks onto the last real block (their
            # contribution is skipped inside the kernel).
            return (0, jnp.minimum(c * kk_per_split + kk, kb_total - 1))
    else:
        def in_idx(c, kk):
            return (0, c * kk_per_split + kk)

    def out_idx(c, kk):
        return (c, 0, 0)

    # VMEM budget: 2 inputs x 2 pipeline buffers at physical block size,
    # plus tiny (B,B) accumulators / output blocks, plus headroom.
    in_block_bytes = 2 * tk * bytes_per_col
    small = 16 * 8 * 128 * 4
    vmem_limit = int(min((vmem_cap * 3) // 4,
                         max(32 * 1024 * 1024,
                             in_block_bytes + small + (8 << 20))))

    cost = pl.CostEstimate(
        flops=6 * b * b * k,                       # three (BxK)(KxB) matmuls
        transcendentals=0,
        bytes_accessed=int(b * k * (isz1 + isz2) + 3 * splits * b * b * 4),
    )

    g12, g11, g22 = pl.pallas_call(
        kernel,
        out_shape=(
            jax.ShapeDtypeStruct((splits, b, b), jnp.float32),
            jax.ShapeDtypeStruct((splits, b, b), jnp.float32),
            jax.ShapeDtypeStruct((splits, b, b), jnp.float32),
        ),
        grid_spec=pltpu.PrefetchScalarGridSpec(
            num_scalar_prefetch=0,
            grid=(splits, kk_per_split),
            in_specs=[
                pl.BlockSpec((b, tk), in_idx),
                pl.BlockSpec((b, tk), in_idx),
            ],
            out_specs=[
                pl.BlockSpec((1, b, b), out_idx),
                pl.BlockSpec((1, b, b), out_idx),
                pl.BlockSpec((1, b, b), out_idx),
            ],
            scratch_shapes=[
                pltpu.VMEM((b, b), jnp.float32),   # Gram D1·D2ᵀ accumulator
                pltpu.VMEM((b, b), jnp.float32),   # Gram D1·D1ᵀ (row ssq)
                pltpu.VMEM((b, b), jnp.float32),   # Gram D2·D2ᵀ (row ssq)
            ],
        ),
        compiler_params=pltpu.CompilerParams(
            dimension_semantics=("parallel", "arbitrary"),
            vmem_limit_bytes=vmem_limit,
        ),
        cost_estimate=cost,
    )(d1f, d2f)

    # Tiny (B x B) epilogue in plain JAX: combine per-split partials,
    # normalize, and take the squared mean.
    gram = jnp.sum(g12, axis=0)                    # (B, B)
    ss1 = jnp.diagonal(jnp.sum(g11, axis=0))       # (B,)
    ss2 = jnp.diagonal(jnp.sum(g22, axis=0))       # (B,)
    n1 = jnp.sqrt(ss1)[:, None] + 1e-6
    n2 = jnp.sqrt(ss2)[None, :] + 1e-6
    g = gram / (n1 * n2)
    return jnp.mean(g * g)


def diff_loss_ref(d1, d2):
    """Pure-JAX reference mirroring the PyTorch forward."""
    b = d1.shape[0]
    d1 = d1.reshape(b, -1).astype(jnp.float32)
    d2 = d2.reshape(b, -1).astype(jnp.float32)
    n1 = jnp.linalg.norm(d1, axis=1, keepdims=True)
    n2 = jnp.linalg.norm(d2, axis=1, keepdims=True)
    d1n = d1 / (n1 + 1e-6)
    d2n = d2 / (n2 + 1e-6)
    return jnp.mean((d1n @ d2n.T) ** 2)


if __name__ == "__main__":
    key = jax.random.PRNGKey(0)
    loss_fn = jax.jit(diff_loss, static_argnames=("tk", "n_splits"))

    # 1) Baseline NCHW shape (module only flattens): B=2, C=4, H=W=16, K=1024.
    k1, k2, key = jax.random.split(key, 3)
    d1 = jax.random.normal(k1, (2, 4, 16, 16), dtype=jnp.float32)
    d2 = jax.random.normal(k2, (2, 4, 16, 16), dtype=jnp.float32)
    out = jax.block_until_ready(loss_fn(d1, d2))
    ref = diff_loss_ref(d1, d2)
    assert jnp.allclose(out, ref, rtol=2e-5, atol=1e-6), (out, ref)

    # 2) Ragged feature dim (K=960, not a multiple of 128): tail-mask path.
    k1, k2, key = jax.random.split(key, 3)
    d1r = jax.random.normal(k1, (3, 4, 16, 15), dtype=jnp.float32)
    d2r = jax.random.normal(k2, (3, 4, 16, 15), dtype=jnp.float32)
    out = jax.block_until_ready(loss_fn(d1r, d2r))
    ref = diff_loss_ref(d1r, d2r)
    assert jnp.allclose(out, ref, rtol=2e-5, atol=1e-6), (out, ref)

    # 2b) Forced uneven dual-split (kb=3, n_splits=2): phantom-block path.
    out = jax.block_until_ready(loss_fn(d1r, d2r, tk=384, n_splits=2))
    assert jnp.allclose(out, ref, rtol=2e-5, atol=1e-6), (out, ref)

    # 3) Larger K (8192): exercises the chip-aware K split / big-tile path.
    k1, k2, key = jax.random.split(key, 3)
    d1 = jax.random.normal(k1, (2, 8, 32, 32), dtype=jnp.float32)
    d2 = jax.random.normal(k2, (2, 8, 32, 32), dtype=jnp.float32)
    out = jax.block_until_ready(loss_fn(d1, d2))
    ref = diff_loss_ref(d1, d2)
    assert jnp.allclose(out, ref, rtol=2e-5, atol=1e-6), (out, ref)

    # 4) bf16 inputs streamed natively through the MXU (f32 accumulation);
    #    differs from the upcast-first reference at bf16-product precision.
    out_bf16 = jax.block_until_ready(
        loss_fn(d1.astype(jnp.bfloat16), d2.astype(jnp.bfloat16)))
    ref_bf16 = diff_loss_ref(d1.astype(jnp.bfloat16), d2.astype(jnp.bfloat16))
    assert jnp.allclose(out_bf16, ref_bf16, rtol=2e-2, atol=1e-5), (
        out_bf16, ref_bf16)

    print("KERNEL_OK")
</pallas_src>

<mosaic_0001>
module attributes {stable_mosaic.version = 11 : i64} {
  func.func @_diff_loss_kernel(%arg0: i32, %arg1: i32, %arg2: memref<2x1024xf32, #tpu.memory_space<vmem>>, %arg3: memref<2x1024xf32, #tpu.memory_space<vmem>>, %arg4: memref<1x2x2xf32, #tpu.memory_space<vmem>>, %arg5: memref<1x2x2xf32, #tpu.memory_space<vmem>>, %arg6: memref<1x2x2xf32, #tpu.memory_space<vmem>>, %arg7: memref<2x2xf32, #tpu.memory_space<vmem>>, %arg8: memref<2x2xf32, #tpu.memory_space<vmem>>, %arg9: memref<2x2xf32, #tpu.memory_space<vmem>>) attributes {dimension_semantics = [#tpu.dimension_semantics<parallel>, #tpu.dimension_semantics<arbitrary>], iteration_bounds = array<i64: 1, 1>, scalar_prefetch = 0 : i64, scratch_operands = 3 : i64, tpu.core_type = #tpu.core_type<tc>, window_params = [{transform_indices = @transform_0, window_bounds = array<i64: 2, 1024>}, {transform_indices = @transform_1, window_bounds = array<i64: 2, 1024>}, {transform_indices = @transform_2, window_bounds = array<i64: 1, 2, 2>}, {transform_indices = @transform_3, window_bounds = array<i64: 1, 2, 2>}, {transform_indices = @transform_4, window_bounds = array<i64: 1, 2, 2>}]} {
    %c0_i32 = arith.constant 0 : i32
    %0 = arith.cmpi eq, %arg1, %c0_i32 : i32
    %1 = arith.extui %0 : i1 to i32
    %c0_i32_0 = arith.constant 0 : i32
    %2 = arith.cmpi ne, %1, %c0_i32_0 : i32
    scf.if %2 {
      %cst_20 = arith.constant 0.000000e+00 : f32
      %20 = vector.broadcast %cst_20 : f32 to vector<2x2xf32>
      %c0_21 = arith.constant 0 : index
      %c0_22 = arith.constant 0 : index
      %21 = vector.load %arg7[%c0_21, %c0_22] : memref<2x2xf32, #tpu.memory_space<vmem>>, vector<2x2xf32>
      tpu.vector_store %arg7[%c0_21, %c0_22], %20 {strides = array<i32>} : memref<2x2xf32, #tpu.memory_space<vmem>>, vector<2x2xf32>,
      %cst_23 = arith.constant 0.000000e+00 : f32
      %22 = vector.broadcast %cst_23 : f32 to vector<2x2xf32>
      %c0_24 = arith.constant 0 : index
      %c0_25 = arith.constant 0 : index
      %23 = vector.load %arg8[%c0_24, %c0_25] : memref<2x2xf32, #tpu.memory_space<vmem>>, vector<2x2xf32>
      tpu.vector_store %arg8[%c0_24, %c0_25], %22 {strides = array<i32>} : memref<2x2xf32, #tpu.memory_space<vmem>>, vector<2x2xf32>,
      %cst_26 = arith.constant 0.000000e+00 : f32
      %24 = vector.broadcast %cst_26 : f32 to vector<2x2xf32>
      %c0_27 = arith.constant 0 : index
      %c0_28 = arith.constant 0 : index
      %25 = vector.load %arg9[%c0_27, %c0_28] : memref<2x2xf32, #tpu.memory_space<vmem>>, vector<2x2xf32>
      tpu.vector_store %arg9[%c0_27, %c0_28], %24 {strides = array<i32>} : memref<2x2xf32, #tpu.memory_space<vmem>>, vector<2x2xf32>,
    } else {
    }
    %c0 = arith.constant 0 : index
    %c0_1 = arith.constant 0 : index
    %3 = vector.load %arg2[%c0, %c0_1] : memref<2x1024xf32, #tpu.memory_space<vmem>>, vector<2x1024xf32>
    %c0_2 = arith.constant 0 : index
    %c0_3 = arith.constant 0 : index
    %4 = vector.load %arg3[%c0_2, %c0_3] : memref<2x1024xf32, #tpu.memory_space<vmem>>, vector<2x1024xf32>
    %c0_4 = arith.constant 0 : index
    %c0_5 = arith.constant 0 : index
    %5 = vector.load %arg7[%c0_4, %c0_5] : memref<2x2xf32, #tpu.memory_space<vmem>>, vector<2x2xf32>
    %cst = arith.constant dense<0.000000e+00> : vector<2x2xf32>
    %6 = tpu.matmul %3, %4, %cst {dimension_numbers = #tpu.dot_dimension_numbers<[1], [1], [0], [0], [0, 0, 1, 0], [], []>} : vector<2x1024xf32>, vector<2x1024xf32>, vector<2x2xf32> -> vector<2x2xf32>
    %7 = arith.addf %5, %6 : vector<2x2xf32>
    %c0_6 = arith.constant 0 : index
    %c0_7 = arith.constant 0 : index
    %8 = vector.load %arg7[%c0_6, %c0_7] : memref<2x2xf32, #tpu.memory_space<vmem>>, vector<2x2xf32>
    tpu.vector_store %arg7[%c0_6, %c0_7], %7 {strides = array<i32>} : memref<2x2xf32, #tpu.memory_space<vmem>>, vector<2x2xf32>,
    %c0_8 = arith.constant 0 : index
    %c0_9 = arith.constant 0 : index
    %9 = vector.load %arg8[%c0_8, %c0_9] : memref<2x2xf32, #tpu.memory_space<vmem>>, vector<2x2xf32>
    %cst_10 = arith.constant dense<0.000000e+00> : vector<2x2xf32>
    %10 = tpu.matmul %3, %3, %cst_10 {dimension_numbers = #tpu.dot_dimension_numbers<[1], [1], [0], [0], [0, 0, 1, 0], [], []>} : vector<2x1024xf32>, vector<2x1024xf32>, vector<2x2xf32> -> vector<2x2xf32>
    %11 = arith.addf %9, %10 : vector<2x2xf32>
    %c0_11 = arith.constant 0 : index
    %c0_12 = arith.constant 0 : index
    %12 = vector.load %arg8[%c0_11, %c0_12] : memref<2x2xf32, #tpu.memory_space<vmem>>, vector<2x2xf32>
    tpu.vector_store %arg8[%c0_11, %c0_12], %11 {strides = array<i32>} : memref<2x2xf32, #tpu.memory_space<vmem>>, vector<2x2xf32>,
    %c0_13 = arith.constant 0 : index
    %c0_14 = arith.constant 0 : index
    %13 = vector.load %arg9[%c0_13, %c0_14] : memref<2x2xf32, #tpu.memory_space<vmem>>, vector<2x2xf32>
    %cst_15 = arith.constant dense<0.000000e+00> : vector<2x2xf32>
    %14 = tpu.matmul %4, %4, %cst_15 {dimension_numbers = #tpu.dot_dimension_numbers<[1], [1], [0], [0], [0, 0, 1, 0], [], []>} : vector<2x1024xf32>, vector<2x1024xf32>, vector<2x2xf32> -> vector<2x2xf32>
    %15 = arith.addf %13, %14 : vector<2x2xf32>
    %c0_16 = arith.constant 0 : index
    %c0_17 = arith.constant 0 : index
    %16 = vector.load %arg9[%c0_16, %c0_17] : memref<2x2xf32, #tpu.memory_space<vmem>>, vector<2x2xf32>
    tpu.vector_store %arg9[%c0_16, %c0_17], %15 {strides = array<i32>} : memref<2x2xf32, #tpu.memory_space<vmem>>, vector<2x2xf32>,
    %c0_i32_18 = arith.constant 0 : i32
    %17 = arith.cmpi eq, %arg1, %c0_i32_18 : i32
    %18 = arith.extui %17 : i1 to i32
    %c0_i32_19 = arith.constant 0 : i32
    %19 = arith.cmpi ne, %18, %c0_i32_19 : i32
    scf.if %19 {
      %c0_20 = arith.constant 0 : index
      %c0_21 = arith.constant 0 : index
      %20 = vector.load %arg7[%c0_20, %c0_21] : memref<2x2xf32, #tpu.memory_space<vmem>>, vector<2x2xf32>
      %c0_22 = arith.constant 0 : index
      %c0_23 = arith.constant 0 : index
      %c0_24 = arith.constant 0 : index
      %21 = vector.load %arg4[%c0_22, %c0_23, %c0_24] : memref<1x2x2xf32, #tpu.memory_space<vmem>>, vector<1x2x2xf32>
      %22 = vector.shape_cast %21 : vector<1x2x2xf32> to vector<2x2xf32>
      %23 = vector.shape_cast %20 : vector<2x2xf32> to vector<1x2x2xf32>
      tpu.vector_store %arg4[%c0_22, %c0_23, %c0_24], %23 {strides = array<i32>} : memref<1x2x2xf32, #tpu.memory_space<vmem>>, vector<1x2x2xf32>,
      %c0_25 = arith.constant 0 : index
      %c0_26 = arith.constant 0 : index
      %24 = vector.load %arg8[%c0_25, %c0_26] : memref<2x2xf32, #tpu.memory_space<vmem>>, vector<2x2xf32>
      %c0_27 = arith.constant 0 : index
      %c0_28 = arith.constant 0 : index
      %c0_29 = arith.constant 0 : index
      %25 = vector.load %arg5[%c0_27, %c0_28, %c0_29] : memref<1x2x2xf32, #tpu.memory_space<vmem>>, vector<1x2x2xf32>
      %26 = vector.shape_cast %25 : vector<1x2x2xf32> to vector<2x2xf32>
      %27 = vector.shape_cast %24 : vector<2x2xf32> to vector<1x2x2xf32>
      tpu.vector_store %arg5[%c0_27, %c0_28, %c0_29], %27 {strides = array<i32>} : memref<1x2x2xf32, #tpu.memory_space<vmem>>, vector<1x2x2xf32>,
      %c0_30 = arith.constant 0 : index
      %c0_31 = arith.constant 0 : index
      %28 = vector.load %arg9[%c0_30, %c0_31] : memref<2x2xf32, #tpu.memory_space<vmem>>, vector<2x2xf32>
      %c0_32 = arith.constant 0 : index
      %c0_33 = arith.constant 0 : index
      %c0_34 = arith.constant 0 : index
      %29 = vector.load %arg6[%c0_32, %c0_33, %c0_34] : memref<1x2x2xf32, #tpu.memory_space<vmem>>, vector<1x2x2xf32>
      %30 = vector.shape_cast %29 : vector<1x2x2xf32> to vector<2x2xf32>
      %31 = vector.shape_cast %28 : vector<2x2xf32> to vector<1x2x2xf32>
      tpu.vector_store %arg6[%c0_32, %c0_33, %c0_34], %31 {strides = array<i32>} : memref<1x2x2xf32, #tpu.memory_space<vmem>>, vector<1x2x2xf32>,
    } else {
    }
    return
  }
  func.func @transform_0(%arg0: i32, %arg1: i32) -> (i32, i32) {
    %c1_i32 = arith.constant 1 : i32
    %0 = arith.muli %arg0, %c1_i32 : i32
    %1 = arith.addi %0, %arg1 : i32
    %c0_i32 = arith.constant 0 : i32
    %c0_i32_0 = arith.constant 0 : i32
    return %c0_i32, %1 : i32, i32
  }
  func.func @transform_1(%arg0: i32, %arg1: i32) -> (i32, i32) {
    %c1_i32 = arith.constant 1 : i32
    %0 = arith.muli %arg0, %c1_i32 : i32
    %1 = arith.addi %0, %arg1 : i32
    %c0_i32 = arith.constant 0 : i32
    %c0_i32_0 = arith.constant 0 : i32
    return %c0_i32, %1 : i32, i32
  }
  func.func @transform_2(%arg0: i32, %arg1: i32) -> (i32, i32, i32) {
    %c0_i32 = arith.constant 0 : i32
    %c0_i32_0 = arith.constant 0 : i32
    %c0_i32_1 = arith.constant 0 : i32
    return %arg0, %c0_i32, %c0_i32_0 : i32, i32, i32
  }
  func.func @transform_3(%arg0: i32, %arg1: i32) -> (i32, i32, i32) {
    %c0_i32 = arith.constant 0 : i32
    %c0_i32_0 = arith.constant 0 : i32
    %c0_i32_1 = arith.constant 0 : i32
    return %arg0, %c0_i32, %c0_i32_0 : i32, i32, i32
  }
  func.func @transform_4(%arg0: i32, %arg1: i32) -> (i32, i32, i32) {
    %c0_i32 = arith.constant 0 : i32
    %c0_i32_0 = arith.constant 0 : i32
    %c0_i32_1 = arith.constant 0 : i32
    return %arg0, %c0_i32, %c0_i32_0 : i32, i32, i32
  }
}

</mosaic_0001>

<llo_original>
// kernel: diff_loss.1
$region0: #{diff_loss.1}
  #allocation0 [shape = 'u32[]', space=smem, size = 0x4, offset = 0x4, fixed_abs, tag = 'smem constant byte address 0x4 - core index']
  #allocation1 [shape = 'u32[72,128]{1,0:T(1,128)}', space=vmem, size = 0x9000, scoped, tag = 'internal scratch']
  #allocation2 [shape = 'f32[2,2]{1,0:T(2,128)}', space=vmem, size = 0x400, scoped, tag = 'scratch operand']
  #allocation3 [shape = 'f32[2,2]{1,0:T(2,128)}', space=vmem, size = 0x400, scoped, tag = 'scratch operand']
  #allocation4 [shape = 'f32[2,2]{1,0:T(2,128)}', space=vmem, size = 0x400, scoped, tag = 'scratch operand']
  %s0 = inlined_call_operand.vmem [shape: f32[2,1024], index: 0, kind: input, shape index: {}]
  %s1 = inlined_call_operand.vmem [shape: f32[2,1024], index: 1, kind: input, shape index: {}]
  %s2 = inlined_call_operand.vmem [shape: f32[1,2,2], index: 2, kind: output, shape index: {0}]
  %s3 = inlined_call_operand.vmem [shape: f32[1,2,2], index: 3, kind: output, shape index: {1}]
  %s4 = inlined_call_operand.vmem [shape: f32[1,2,2], index: 4, kind: output, shape index: {2}]
  %5 = xla_tuple %s2, %s3, %s4
  %s6 = sld [smem:[#allocation0]]
  $region42: #{diff_loss.1} parent=0
    _
  %s8 = ssub.s32 1, %s6
  %s9 = scalar_select 0, %s8, %s6
  // Predicated region
  $region2: #{diff_loss.1} parent=0 // pred_check
    _
  $region3: #{diff_loss.1} parent=0 // pred_check_branch
    %11 = sbr.rel (0) target = $region5
  $region4: #{diff_loss.1} parent=0 // pred_region
    %s12 = sadd.s32 0, 0
    %s13 = smul.u32 8, %s12
    %p14 = scmp.lt.s32.totalorder %s13, 7
    %s15 = scalar_select %p14, %s13, 7
    %s16 = smul.addr %s15, 2
    %s17 = scalar_lea.vmem %s0, %s16
    %s18 = sadd.s32 0, 0
    %s19 = smul.u32 8, %s18
  $region5: #{diff_loss.1} parent=0 // pred_fallthru
    _
  // Predicated region
  $region6: #{diff_loss.1} parent=0 // pred_check
    _
  $region7: #{diff_loss.1} parent=0 // pred_check_branch
    %21 = sbr.rel (0) target = $region9
  $region8: #{diff_loss.1} parent=0 // pred_region
    %s22 = sadd.s32 0, 0
    %s23 = smul.u32 8, %s22
    %p24 = scmp.lt.s32.totalorder %s23, 7
    %s25 = scalar_select %p24, %s23, 7
    %s26 = smul.addr %s25, 2
    %s27 = scalar_lea.vmem %s1, %s26
    %s28 = sadd.s32 0, 0
    %s29 = smul.u32 8, %s28
  $region9: #{diff_loss.1} parent=0 // pred_fallthru
    _
  %s30 = sadd.s32 0, 0
  %s31 = smul.u32 8, %s30
  %p32 = scmp.lt.s32.totalorder %s31, 7
  %s33 = scalar_select %p32, %s31, 7
  %s34 = smul.addr %s33, 2
  %s35 = scalar_lea.vmem %s0, %s34
  %s36 = sadd.s32 0, 0
  %s37 = smul.u32 8, %s36
  %p38 = scmp.lt.s32.totalorder %s37, 7
  %s39 = scalar_select %p38, %s37, 7
  %s40 = smul.addr %s39, 2
  %s41 = scalar_lea.vmem %s1, %s40
  %s42 = sadd.s32 0, 0
  %s43 = smul.u32 8, %s42
  %p44 = scmp.lt.s32.totalorder %s43, 7
  %s45 = scalar_select %p44, %s43, 7
  %s46 = smul.addr %s45, 2
  %s47 = scalar_lea.vmem %s0, %s46
  %s48 = sadd.s32 0, 0
  %s49 = smul.u32 8, %s48
  %s50 = sadd.s32 0, 0
  %s51 = smul.u32 8, %s50
  %p52 = scmp.lt.s32.totalorder %s51, 7
  %s53 = scalar_select %p52, %s51, 7
  %s54 = smul.addr %s53, 2
  %s55 = scalar_lea.vmem %s1, %s54
  %s56 = sadd.s32 0, 0
  %s57 = smul.u32 8, %s56
  %p58 = scmp.eq.s32.totalorder 0, 0
  // Predicated region
  $region10: #{diff_loss.1} parent=0 // pred_check
    %p59 = pneg %p58
  $region11: #{diff_loss.1} parent=0 // pred_check_branch
    %61 = sbr.rel (%p59) target = $region13
  $region12: #{diff_loss.1} parent=0 // pred_region
    %vm62 = vcmask 9216
    %63 = vst.msk [vmem:[#allocation2] sm:$0x3] %vm62, 0.0
    %64 = vst.msk [vmem:[#allocation3] sm:$0x3] %vm62, 0.0
    %65 = vst.msk [vmem:[#allocation4] sm:$0x3] %vm62, 0.0
  $region13: #{diff_loss.1} parent=0 // pred_fallthru
    _
  %v66 = vld [vmem:[%s47] sm:$0xff]
  %v67 = vld [vmem:[%s47 + $0x8] sm:$0xff]
  %v68 = vld [vmem:[%s55] sm:$0xff]
  %v69 = vld [vmem:[%s55 + $0x8] sm:$0xff]
  %v70 = vld [vmem:[#allocation2] sm:$0x3]
  %73 = vst [vmem:[#allocation1] ss:$4 sm:$0xff] %v66
  %s74 = scalar_lea.vmem [#allocation1], 32
  %75 = vst [vmem:[%s74] ss:$4 sm:$0xff] %v67
  %v76 = vld.sshfl [vmem:[#allocation1] sm:$0xff pattern:$0x73625140]
  %v77 = vld.sshfl [vmem:[#allocation1 + $0x8] sm:$0xff pattern:$0x73625140]
  %v78 = vld.sshfl [vmem:[#allocation1 + $0x10] sm:$0xff pattern:$0x73625140]
  %v79 = vld.sshfl [vmem:[#allocation1 + $0x18] sm:$0xff pattern:$0x73625140]
  %v80 = vld.sshfl [vmem:[#allocation1 + $0x20] sm:$0xff pattern:$0x73625140]
  %v81 = vld.sshfl [vmem:[#allocation1 + $0x28] sm:$0xff pattern:$0x73625140]
  %v82 = vld.sshfl [vmem:[#allocation1 + $0x30] sm:$0xff pattern:$0x73625140]
  %v83 = vld.sshfl [vmem:[#allocation1 + $0x38] sm:$0xff pattern:$0x73625140]
  %94 = vst [vmem:[#allocation1] ss:$4 sm:$0xff] %v68
  %s95 = scalar_lea.vmem [#allocation1], 32
  %96 = vst [vmem:[%s95] ss:$4 sm:$0xff] %v69
  %v97 = vld.sshfl [vmem:[#allocation1] sm:$0xff pattern:$0x73625140]
  %v98 = vld.sshfl [vmem:[#allocation1 + $0x8] sm:$0xff pattern:$0x73625140]
  %v99 = vld.sshfl [vmem:[#allocation1 + $0x10] sm:$0xff pattern:$0x73625140]
  %v100 = vld.sshfl [vmem:[#allocation1 + $0x18] sm:$0xff pattern:$0x73625140]
  %v101 = vld.sshfl [vmem:[#allocation1 + $0x20] sm:$0xff pattern:$0x73625140]
  %v102 = vld.sshfl [vmem:[#allocation1 + $0x28] sm:$0xff pattern:$0x73625140]
  %v103 = vld.sshfl [vmem:[#allocation1 + $0x30] sm:$0xff pattern:$0x73625140]
  %v104 = vld.sshfl [vmem:[#allocation1 + $0x38] sm:$0xff pattern:$0x73625140]
  %113 = vmatpush.xpose.msra.mxu0 0.0
  %114 = vmatpush.xpose.msra.mxu0 0.0
  %115 = vmatpush.xpose.msra.mxu0 0.0
  %116 = vmatpush.xpose.msra.mxu0 0.0
  %117 = vmatpush.xpose.msra.mxu0 0.0
  %118 = vmatpush.xpose.msra.mxu0 0.0
  %119 = vmatpush.xpose.msra.mxu0 0.0
  %120 = vmatpush.xpose.msra.mxu0 0.0
  %121 = vmatpush.xpose.msra.mxu0 0.0
  %122 = vmatpush.xpose.msra.mxu0 0.0
  %123 = vmatpush.xpose.msra.mxu0 0.0
  %124 = vmatpush.xpose.msra.mxu0 0.0
  %125 = vmatpush.xpose.msra.mxu0 0.0
  %126 = vmatpush.xpose.msra.mxu0 0.0
  %127 = vmatpush.xpose.msra.mxu0 0.0
  %128 = vmatpush.xpose.msra.mxu0 %v97
  %129 = vmatmul.f32.gmra.mxu0 %v76
  %v130 = vpop.f32.mrf.mxu0
  %v131 = vadd.f32 0.0, %v130
  %132 = vdwg.mxu0
  %133 = vmatpush.xpose.msra.mxu0 0.0
  %134 = vmatpush.xpose.msra.mxu0 0.0
  %135 = vmatpush.xpose.msra.mxu0 0.0
  %136 = vmatpush.xpose.msra.mxu0 0.0
  %137 = vmatpush.xpose.msra.mxu0 0.0
  %138 = vmatpush.xpose.msra.mxu0 0.0
  %139 = vmatpush.xpose.msra.mxu0 0.0
  %140 = vmatpush.xpose.msra.mxu0 0.0
  %141 = vmatpush.xpose.msra.mxu0 0.0
  %142 = vmatpush.xpose.msra.mxu0 0.0
  %143 = vmatpush.xpose.msra.mxu0 0.0
  %144 = vmatpush.xpose.msra.mxu0 0.0
  %145 = vmatpush.xpose.msra.mxu0 0.0
  %146 = vmatpush.xpose.msra.mxu0 0.0
  %147 = vmatpush.xpose.msra.mxu0 0.0
  %148 = vmatpush.xpose.msra.mxu0 %v98
  %149 = vmatmul.f32.gmra.mxu0 %v77
  %v150 = vpop.f32.mrf.mxu0
  %v151 = vadd.f32 %v131, %v150
  %152 = vdwg.mxu0
  %153 = vmatpush.xpose.msra.mxu0 0.0
  %154 = vmatpush.xpose.msra.mxu0 0.0
  %155 = vmatpush.xpose.msra.mxu0 0.0
  %156 = vmatpush.xpose.msra.mxu0 0.0
  %157 = vmatpush.xpose.msra.mxu0 0.0
  %158 = vmatpush.xpose.msra.mxu0 0.0
  %159 = vmatpush.xpose.msra.mxu0 0.0
  %160 = vmatpush.xpose.msra.mxu0 0.0
  %161 = vmatpush.xpose.msra.mxu0 0.0
  %162 = vmatpush.xpose.msra.mxu0 0.0
  %163 = vmatpush.xpose.msra.mxu0 0.0
  %164 = vmatpush.xpose.msra.mxu0 0.0
  %165 = vmatpush.xpose.msra.mxu0 0.0
  %166 = vmatpush.xpose.msra.mxu0 0.0
  %167 = vmatpush.xpose.msra.mxu0 0.0
  %168 = vmatpush.xpose.msra.mxu0 %v99
  %169 = vmatmul.f32.gmra.mxu0 %v78
  %v170 = vpop.f32.mrf.mxu0
  %v171 = vadd.f32 %v151, %v170
  %172 = vdwg.mxu0
  %173 = vmatpush.xpose.msra.mxu0 0.0
  %174 = vmatpush.xpose.msra.mxu0 0.0
  %175 = vmatpush.xpose.msra.mxu0 0.0
  %176 = vmatpush.xpose.msra.mxu0 0.0
  %177 = vmatpush.xpose.msra.mxu0 0.0
  %178 = vmatpush.xpose.msra.mxu0 0.0
  %179 = vmatpush.xpose.msra.mxu0 0.0
  %180 = vmatpush.xpose.msra.mxu0 0.0
  %181 = vmatpush.xpose.msra.mxu0 0.0
  %182 = vmatpush.xpose.msra.mxu0 0.0
  %183 = vmatpush.xpose.msra.mxu0 0.0
  %184 = vmatpush.xpose.msra.mxu0 0.0
  %185 = vmatpush.xpose.msra.mxu0 0.0
  %186 = vmatpush.xpose.msra.mxu0 0.0
  %187 = vmatpush.xpose.msra.mxu0 0.0
  %188 = vmatpush.xpose.msra.mxu0 %v100
  %189 = vmatmul.f32.gmra.mxu0 %v79
  %v190 = vpop.f32.mrf.mxu0
  %v191 = vadd.f32 %v171, %v190
  %192 = vdwg.mxu0
  %193 = vmatpush.xpose.msra.mxu0 0.0
  %194 = vmatpush.xpose.msra.mxu0 0.0
  %195 = vmatpush.xpose.msra.mxu0 0.0
  %196 = vmatpush.xpose.msra.mxu0 0.0
  %197 = vmatpush.xpose.msra.mxu0 0.0
  %198 = vmatpush.xpose.msra.mxu0 0.0
  %199 = vmatpush.xpose.msra.mxu0 0.0
  %200 = vmatpush.xpose.msra.mxu0 0.0
  %201 = vmatpush.xpose.msra.mxu0 0.0
  %202 = vmatpush.xpose.msra.mxu0 0.0
  %203 = vmatpush.xpose.msra.mxu0 0.0
  %204 = vmatpush.xpose.msra.mxu0 0.0
  %205 = vmatpush.xpose.msra.mxu0 0.0
  %206 = vmatpush.xpose.msra.mxu0 0.0
  %207 = vmatpush.xpose.msra.mxu0 0.0
  %208 = vmatpush.xpose.msra.mxu0 %v101
  %209 = vmatmul.f32.gmra.mxu0 %v80
  %v210 = vpop.f32.mrf.mxu0
  %v211 = vadd.f32 %v191, %v210
  %212 = vdwg.mxu0
  %213 = vmatpush.xpose.msra.mxu0 0.0
  %214 = vmatpush.xpose.msra.mxu0 0.0
  %215 = vmatpush.xpose.msra.mxu0 0.0
  %216 = vmatpush.xpose.msra.mxu0 0.0
  %217 = vmatpush.xpose.msra.mxu0 0.0
  %218 = vmatpush.xpose.msra.mxu0 0.0
  %219 = vmatpush.xpose.msra.mxu0 0.0
  %220 = vmatpush.xpose.msra.mxu0 0.0
  %221 = vmatpush.xpose.msra.mxu0 0.0
  %222 = vmatpush.xpose.msra.mxu0 0.0
  %223 = vmatpush.xpose.msra.mxu0 0.0
  %224 = vmatpush.xpose.msra.mxu0 0.0
  %225 = vmatpush.xpose.msra.mxu0 0.0
  %226 = vmatpush.xpose.msra.mxu0 0.0
  %227 = vmatpush.xpose.msra.mxu0 0.0
  %228 = vmatpush.xpose.msra.mxu0 %v102
  %229 = vmatmul.f32.gmra.mxu0 %v81
  %v230 = vpop.f32.mrf.mxu0
  %v231 = vadd.f32 %v211, %v230
  %232 = vdwg.mxu0
  %233 = vmatpush.xpose.msra.mxu0 0.0
  %234 = vmatpush.xpose.msra.mxu0 0.0
  %235 = vmatpush.xpose.msra.mxu0 0.0
  %236 = vmatpush.xpose.msra.mxu0 0.0
  %237 = vmatpush.xpose.msra.mxu0 0.0
  %238 = vmatpush.xpose.msra.mxu0 0.0
  %239 = vmatpush.xpose.msra.mxu0 0.0
  %240 = vmatpush.xpose.msra.mxu0 0.0
  %241 = vmatpush.xpose.msra.mxu0 0.0
  %242 = vmatpush.xpose.msra.mxu0 0.0
  %243 = vmatpush.xpose.msra.mxu0 0.0
  %244 = vmatpush.xpose.msra.mxu0 0.0
  %245 = vmatpush.xpose.msra.mxu0 0.0
  %246 = vmatpush.xpose.msra.mxu0 0.0
  %247 = vmatpush.xpose.msra.mxu0 0.0
  %248 = vmatpush.xpose.msra.mxu0 %v103
  %249 = vmatmul.f32.gmra.mxu0 %v82
  %v250 = vpop.f32.mrf.mxu0
  %v251 = vadd.f32 %v231, %v250
  %252 = vdwg.mxu0
  %253 = vmatpush.xpose.msra.mxu0 0.0
  %254 = vmatpush.xpose.msra.mxu0 0.0
  %255 = vmatpush.xpose.msra.mxu0 0.0
  %256 = vmatpush.xpose.msra.mxu0 0.0
  %257 = vmatpush.xpose.msra.mxu0 0.0
  %258 = vmatpush.xpose.msra.mxu0 0.0
  %259 = vmatpush.xpose.msra.mxu0 0.0
  %260 = vmatpush.xpose.msra.mxu0 0.0
  %261 = vmatpush.xpose.msra.mxu0 0.0
  %262 = vmatpush.xpose.msra.mxu0 0.0
  %263 = vmatpush.xpose.msra.mxu0 0.0
  %264 = vmatpush.xpose.msra.mxu0 0.0
  %265 = vmatpush.xpose.msra.mxu0 0.0
  %266 = vmatpush.xpose.msra.mxu0 0.0
  %267 = vmatpush.xpose.msra.mxu0 0.0
  %268 = vmatpush.xpose.msra.mxu0 %v104
  %269 = vmatmul.f32.gmra.mxu0 %v83
  %v270 = vpop.f32.mrf.mxu0
  %v271 = vadd.f32 %v251, %v270
  %272 = vdwg.mxu0
  %v273 = vadd.f32 %v70, %v271
  %vm274 = vcmask 9216
  %275 = vst.msk [vmem:[#allocation2] sm:$0x3] %vm274, %v273
  %v276 = vld [vmem:[#allocation3] sm:$0x3]
  %277 = vst [vmem:[#allocation1] ss:$4 sm:$0xff] %v66
  %s278 = scalar_lea.vmem [#allocation1], 32
  %279 = vst [vmem:[%s278] ss:$4 sm:$0xff] %v67
  %v280 = vld.sshfl [vmem:[#allocation1] sm:$0xff pattern:$0x73625140]
  %v281 = vld.sshfl [vmem:[#allocation1 + $0x8] sm:$0xff pattern:$0x73625140]
  %v282 = vld.sshfl [vmem:[#allocation1 + $0x10] sm:$0xff pattern:$0x73625140]
  %v283 = vld.sshfl [vmem:[#allocation1 + $0x18] sm:$0xff pattern:$0x73625140]
  %v284 = vld.sshfl [vmem:[#allocation1 + $0x20] sm:$0xff pattern:$0x73625140]
  %v285 = vld.sshfl [vmem:[#allocation1 + $0x28] sm:$0xff pattern:$0x73625140]
  %v286 = vld.sshfl [vmem:[#allocation1 + $0x30] sm:$0xff pattern:$0x73625140]
  %v287 = vld.sshfl [vmem:[#allocation1 + $0x38] sm:$0xff pattern:$0x73625140]
  %296 = vst [vmem:[#allocation1] ss:$4 sm:$0xff] %v66
  %s297 = scalar_lea.vmem [#allocation1], 32
  %298 = vst [vmem:[%s297] ss:$4 sm:$0xff] %v67
  %v299 = vld.sshfl [vmem:[#allocation1] sm:$0xff pattern:$0x73625140]
  %v300 = vld.sshfl [vmem:[#allocation1 + $0x8] sm:$0xff pattern:$0x73625140]
  %v301 = vld.sshfl [vmem:[#allocation1 + $0x10] sm:$0xff pattern:$0x73625140]
  %v302 = vld.sshfl [vmem:[#allocation1 + $0x18] sm:$0xff pattern:$0x73625140]
  %v303 = vld.sshfl [vmem:[#allocation1 + $0x20] sm:$0xff pattern:$0x73625140]
  %v304 = vld.sshfl [vmem:[#allocation1 + $0x28] sm:$0xff pattern:$0x73625140]
  %v305 = vld.sshfl [vmem:[#allocation1 + $0x30] sm:$0xff pattern:$0x73625140]
  %v306 = vld.sshfl [vmem:[#allocation1 + $0x38] sm:$0xff pattern:$0x73625140]
  %315 = vmatpush.xpose.msra.mxu0 0.0
  %316 = vmatpush.xpose.msra.mxu0 0.0
  %317 = vmatpush.xpose.msra.mxu0 0.0
  %318 = vmatpush.xpose.msra.mxu0 0.0
  %319 = vmatpush.xpose.msra.mxu0 0.0
  %320 = vmatpush.xpose.msra.mxu0 0.0
  %321 = vmatpush.xpose.msra.mxu0 0.0
  %322 = vmatpush.xpose.msra.mxu0 0.0
  %323 = vmatpush.xpose.msra.mxu0 0.0
  %324 = vmatpush.xpose.msra.mxu0 0.0
  %325 = vmatpush.xpose.msra.mxu0 0.0
  %326 = vmatpush.xpose.msra.mxu0 0.0
  %327 = vmatpush.xpose.msra.mxu0 0.0
  %328 = vmatpush.xpose.msra.mxu0 0.0
  %329 = vmatpush.xpose.msra.mxu0 0.0
  %330 = vmatpush.xpose.msra.mxu0 %v299
  %331 = vmatmul.f32.gmra.mxu0 %v280
  %v332 = vpop.f32.mrf.mxu0
  %v333 = vadd.f32 0.0, %v332
  %334 = vdwg.mxu0
  %335 = vmatpush.xpose.msra.mxu0 0.0
  %336 = vmatpush.xpose.msra.mxu0 0.0
  %337 = vmatpush.xpose.msra.mxu0 0.0
  %338 = vmatpush.xpose.msra.mxu0 0.0
  %339 = vmatpush.xpose.msra.mxu0 0.0
  %340 = vmatpush.xpose.msra.mxu0 0.0
  %341 = vmatpush.xpose.msra.mxu0 0.0
  %342 = vmatpush.xpose.msra.mxu0 0.0
  %343 = vmatpush.xpose.msra.mxu0 0.0
  %344 = vmatpush.xpose.msra.mxu0 0.0
  %345 = vmatpush.xpose.msra.mxu0 0.0
  %346 = vmatpush.xpose.msra.mxu0 0.0
  %347 = vmatpush.xpose.msra.mxu0 0.0
  %348 = vmatpush.xpose.msra.mxu0 0.0
  %349 = vmatpush.xpose.msra.mxu0 0.0
  %350 = vmatpush.xpose.msra.mxu0 %v300
  %351 = vmatmul.f32.gmra.mxu0 %v281
  %v352 = vpop.f32.mrf.mxu0
  %v353 = vadd.f32 %v333, %v352
  %354 = vdwg.mxu0
  %355 = vmatpush.xpose.msra.mxu0 0.0
  %356 = vmatpush.xpose.msra.mxu0 0.0
  %357 = vmatpush.xpose.msra.mxu0 0.0
  %358 = vmatpush.xpose.msra.mxu0 0.0
  %359 = vmatpush.xpose.msra.mxu0 0.0
  %360 = vmatpush.xpose.msra.mxu0 0.0
  %361 = vmatpush.xpose.msra.mxu0 0.0
  %362 = vmatpush.xpose.msra.mxu0 0.0
  %363 = vmatpush.xpose.msra.mxu0 0.0
  %364 = vmatpush.xpose.msra.mxu0 0.0
  %365 = vmatpush.xpose.msra.mxu0 0.0
  %366 = vmatpush.xpose.msra.mxu0 0.0
  %367 = vmatpush.xpose.msra.mxu0 0.0
  %368 = vmatpush.xpose.msra.mxu0 0.0
  %369 = vmatpush.xpose.msra.mxu0 0.0
  %370 = vmatpush.xpose.msra.mxu0 %v301
  %371 = vmatmul.f32.gmra.mxu0 %v282
  %v372 = vpop.f32.mrf.mxu0
  %v373 = vadd.f32 %v353, %v372
  %374 = vdwg.mxu0
  %375 = vmatpush.xpose.msra.mxu0 0.0
  %376 = vmatpush.xpose.msra.mxu0 0.0
  %377 = vmatpush.xpose.msra.mxu0 0.0
  %378 = vmatpush.xpose.msra.mxu0 0.0
  %379 = vmatpush.xpose.msra.mxu0 0.0
  %380 = vmatpush.xpose.msra.mxu0 0.0
  %381 = vmatpush.xpose.msra.mxu0 0.0
  %382 = vmatpush.xpose.msra.mxu0 0.0
  %383 = vmatpush.xpose.msra.mxu0 0.0
  %384 = vmatpush.xpose.msra.mxu0 0.0
  %385 = vmatpush.xpose.msra.mxu0 0.0
  %386 = vmatpush.xpose.msra.mxu0 0.0
  %387 = vmatpush.xpose.msra.mxu0 0.0
  %388 = vmatpush.xpose.msra.mxu0 0.0
  %389 = vmatpush.xpose.msra.mxu0 0.0
  %390 = vmatpush.xpose.msra.mxu0 %v302
  %391 = vmatmul.f32.gmra.mxu0 %v283
  %v392 = vpop.f32.mrf.mxu0
  %v393 = vadd.f32 %v373, %v392
  %394 = vdwg.mxu0
  %395 = vmatpush.xpose.msra.mxu0 0.0
  %396 = vmatpush.xpose.msra.mxu0 0.0
  %397 = vmatpush.xpose.msra.mxu0 0.0
  %398 = vmatpush.xpose.msra.mxu0 0.0
  %399 = vmatpush.xpose.msra.mxu0 0.0
  %400 = vmatpush.xpose.msra.mxu0 0.0
  %401 = vmatpush.xpose.msra.mxu0 0.0
  %402 = vmatpush.xpose.msra.mxu0 0.0
  %403 = vmatpush.xpose.msra.mxu0 0.0
  %404 = vmatpush.xpose.msra.mxu0 0.0
  %405 = vmatpush.xpose.msra.mxu0 0.0
  %406 = vmatpush.xpose.msra.mxu0 0.0
  %407 = vmatpush.xpose.msra.mxu0 0.0
  %408 = vmatpush.xpose.msra.mxu0 0.0
  %409 = vmatpush.xpose.msra.mxu0 0.0
  %410 = vmatpush.xpose.msra.mxu0 %v303
  %411 = vmatmul.f32.gmra.mxu0 %v284
  %v412 = vpop.f32.mrf.mxu0
  %v413 = vadd.f32 %v393, %v412
  %414 = vdwg.mxu0
  %415 = vmatpush.xpose.msra.mxu0 0.0
  %416 = vmatpush.xpose.msra.mxu0 0.0
  %417 = vmatpush.xpose.msra.mxu0 0.0
  %418 = vmatpush.xpose.msra.mxu0 0.0
  %419 = vmatpush.xpose.msra.mxu0 0.0
  %420 = vmatpush.xpose.msra.mxu0 0.0
  %421 = vmatpush.xpose.msra.mxu0 0.0
  %422 = vmatpush.xpose.msra.mxu0 0.0
  %423 = vmatpush.xpose.msra.mxu0 0.0
  %424 = vmatpush.xpose.msra.mxu0 0.0
  %425 = vmatpush.xpose.msra.mxu0 0.0
  %426 = vmatpush.xpose.msra.mxu0 0.0
  %427 = vmatpush.xpose.msra.mxu0 0.0
  %428 = vmatpush.xpose.msra.mxu0 0.0
  %429 = vmatpush.xpose.msra.mxu0 0.0
  %430 = vmatpush.xpose.msra.mxu0 %v304
  %431 = vmatmul.f32.gmra.mxu0 %v285
  %v432 = vpop.f32.mrf.mxu0
  %v433 = vadd.f32 %v413, %v432
  %434 = vdwg.mxu0
  %435 = vmatpush.xpose.msra.mxu0 0.0
  %436 = vmatpush.xpose.msra.mxu0 0.0
  %437 = vmatpush.xpose.msra.mxu0 0.0
  %438 = vmatpush.xpose.msra.mxu0 0.0
  %439 = vmatpush.xpose.msra.mxu0 0.0
  %440 = vmatpush.xpose.msra.mxu0 0.0
  %441 = vmatpush.xpose.msra.mxu0 0.0
  %442 = vmatpush.xpose.msra.mxu0 0.0
  %443 = vmatpush.xpose.msra.mxu0 0.0
  %444 = vmatpush.xpose.msra.mxu0 0.0
  %445 = vmatpush.xpose.msra.mxu0 0.0
  %446 = vmatpush.xpose.msra.mxu0 0.0
  %447 = vmatpush.xpose.msra.mxu0 0.0
  %448 = vmatpush.xpose.msra.mxu0 0.0
  %449 = vmatpush.xpose.msra.mxu0 0.0
  %450 = vmatpush.xpose.msra.mxu0 %v305
  %451 = vmatmul.f32.gmra.mxu0 %v286
  %v452 = vpop.f32.mrf.mxu0
  %v453 = vadd.f32 %v433, %v452
  %454 = vdwg.mxu0
  %455 = vmatpush.xpose.msra.mxu0 0.0
  %456 = vmatpush.xpose.msra.mxu0 0.0
  %457 = vmatpush.xpose.msra.mxu0 0.0
  %458 = vmatpush.xpose.msra.mxu0 0.0
  %459 = vmatpush.xpose.msra.mxu0 0.0
  %460 = vmatpush.xpose.msra.mxu0 0.0
  %461 = vmatpush.xpose.msra.mxu0 0.0
  %462 = vmatpush.xpose.msra.mxu0 0.0
  %463 = vmatpush.xpose.msra.mxu0 0.0
  %464 = vmatpush.xpose.msra.mxu0 0.0
  %465 = vmatpush.xpose.msra.mxu0 0.0
  %466 = vmatpush.xpose.msra.mxu0 0.0
  %467 = vmatpush.xpose.msra.mxu0 0.0
  %468 = vmatpush.xpose.msra.mxu0 0.0
  %469 = vmatpush.xpose.msra.mxu0 0.0
  %470 = vmatpush.xpose.msra.mxu0 %v306
  %471 = vmatmul.f32.gmra.mxu0 %v287
  %v472 = vpop.f32.mrf.mxu0
  %v473 = vadd.f32 %v453, %v472
  %474 = vdwg.mxu0
  %v475 = vadd.f32 %v276, %v473
  %476 = vst.msk [vmem:[#allocation3] sm:$0x3] %vm274, %v475
  %v477 = vld [vmem:[#allocation4] sm:$0x3]
  %478 = vst [vmem:[#allocation1] ss:$4 sm:$0xff] %v68
  %s479 = scalar_lea.vmem [#allocation1], 32
  %480 = vst [vmem:[%s479] ss:$4 sm:$0xff] %v69
  %v481 = vld.sshfl [vmem:[#allocation1] sm:$0xff pattern:$0x73625140]
  %v482 = vld.sshfl [vmem:[#allocation1 + $0x8] sm:$0xff pattern:$0x73625140]
  %v483 = vld.sshfl [vmem:[#allocation1 + $0x10] sm:$0xff pattern:$0x73625140]
  %v484 = vld.sshfl [vmem:[#allocation1 + $0x18] sm:$0xff pattern:$0x73625140]
  %v485 = vld.sshfl [vmem:[#allocation1 + $0x20] sm:$0xff pattern:$0x73625140]
  %v486 = vld.sshfl [vmem:[#allocation1 + $0x28] sm:$0xff pattern:$0x73625140]
  %v487 = vld.sshfl [vmem:[#allocation1 + $0x30] sm:$0xff pattern:$0x73625140]
  %v488 = vld.sshfl [vmem:[#allocation1 + $0x38] sm:$0xff pattern:$0x73625140]
  %497 = vst [vmem:[#allocation1] ss:$4 sm:$0xff] %v68
  %s498 = scalar_lea.vmem [#allocation1], 32
  %499 = vst [vmem:[%s498] ss:$4 sm:$0xff] %v69
  %v500 = vld.sshfl [vmem:[#allocation1] sm:$0xff pattern:$0x73625140]
  %v501 = vld.sshfl [vmem:[#allocation1 + $0x8] sm:$0xff pattern:$0x73625140]
  %v502 = vld.sshfl [vmem:[#allocation1 + $0x10] sm:$0xff pattern:$0x73625140]
  %v503 = vld.sshfl [vmem:[#allocation1 + $0x18] sm:$0xff pattern:$0x73625140]
  %v504 = vld.sshfl [vmem:[#allocation1 + $0x20] sm:$0xff pattern:$0x73625140]
  %v505 = vld.sshfl [vmem:[#allocation1 + $0x28] sm:$0xff pattern:$0x73625140]
  %v506 = vld.sshfl [vmem:[#allocation1 + $0x30] sm:$0xff pattern:$0x73625140]
  %v507 = vld.sshfl [vmem:[#allocation1 + $0x38] sm:$0xff pattern:$0x73625140]
  %516 = vmatpush.xpose.msra.mxu0 0.0
  %517 = vmatpush.xpose.msra.mxu0 0.0
  %518 = vmatpush.xpose.msra.mxu0 0.0
  %519 = vmatpush.xpose.msra.mxu0 0.0
  %520 = vmatpush.xpose.msra.mxu0 0.0
  %521 = vmatpush.xpose.msra.mxu0 0.0
  %522 = vmatpush.xpose.msra.mxu0 0.0
  %523 = vmatpush.xpose.msra.mxu0 0.0
  %524 = vmatpush.xpose.msra.mxu0 0.0
  %525 = vmatpush.xpose.msra.mxu0 0.0
  %526 = vmatpush.xpose.msra.mxu0 0.0
  %527 = vmatpush.xpose.msra.mxu0 0.0
  %528 = vmatpush.xpose.msra.mxu0 0.0
  %529 = vmatpush.xpose.msra.mxu0 0.0
  %530 = vmatpush.xpose.msra.mxu0 0.0
  %531 = vmatpush.xpose.msra.mxu0 %v500
  %532 = vmatmul.f32.gmra.mxu0 %v481
  %v533 = vpop.f32.mrf.mxu0
  %v534 = vadd.f32 0.0, %v533
  %535 = vdwg.mxu0
  %536 = vmatpush.xpose.msra.mxu0 0.0
  %537 = vmatpush.xpose.msra.mxu0 0.0
  %538 = vmatpush.xpose.msra.mxu0 0.0
  %539 = vmatpush.xpose.msra.mxu0 0.0
  %540 = vmatpush.xpose.msra.mxu0 0.0
  %541 = vmatpush.xpose.msra.mxu0 0.0
  %542 = vmatpush.xpose.msra.mxu0 0.0
  %543 = vmatpush.xpose.msra.mxu0 0.0
  %544 = vmatpush.xpose.msra.mxu0 0.0
  %545 = vmatpush.xpose.msra.mxu0 0.0
  %546 = vmatpush.xpose.msra.mxu0 0.0
  %547 = vmatpush.xpose.msra.mxu0 0.0
  %548 = vmatpush.xpose.msra.mxu0 0.0
  %549 = vmatpush.xpose.msra.mxu0 0.0
  %550 = vmatpush.xpose.msra.mxu0 0.0
  %551 = vmatpush.xpose.msra.mxu0 %v501
  %552 = vmatmul.f32.gmra.mxu0 %v482
  %v553 = vpop.f32.mrf.mxu0
  %v554 = vadd.f32 %v534, %v553
  %555 = vdwg.mxu0
  %556 = vmatpush.xpose.msra.mxu0 0.0
  %557 = vmatpush.xpose.msra.mxu0 0.0
  %558 = vmatpush.xpose.msra.mxu0 0.0
  %559 = vmatpush.xpose.msra.mxu0 0.0
  %560 = vmatpush.xpose.msra.mxu0 0.0
  %561 = vmatpush.xpose.msra.mxu0 0.0
  %562 = vmatpush.xpose.msra.mxu0 0.0
  %563 = vmatpush.xpose.msra.mxu0 0.0
  %564 = vmatpush.xpose.msra.mxu0 0.0
  %565 = vmatpush.xpose.msra.mxu0 0.0
  %566 = vmatpush.xpose.msra.mxu0 0.0
  %567 = vmatpush.xpose.msra.mxu0 0.0
  %568 = vmatpush.xpose.msra.mxu0 0.0
  %569 = vmatpush.xpose.msra.mxu0 0.0
  %570 = vmatpush.xpose.msra.mxu0 0.0
  %571 = vmatpush.xpose.msra.mxu0 %v502
  %572 = vmatmul.f32.gmra.mxu0 %v483
  %v573 = vpop.f32.mrf.mxu0
  %v574 = vadd.f32 %v554, %v573
  %575 = vdwg.mxu0
  %576 = vmatpush.xpose.msra.mxu0 0.0
  %577 = vmatpush.xpose.msra.mxu0 0.0
  %578 = vmatpush.xpose.msra.mxu0 0.0
  %579 = vmatpush.xpose.msra.mxu0 0.0
  %580 = vmatpush.xpose.msra.mxu0 0.0
  %581 = vmatpush.xpose.msra.mxu0 0.0
  %582 = vmatpush.xpose.msra.mxu0 0.0
  %583 = vmatpush.xpose.msra.mxu0 0.0
  %584 = vmatpush.xpose.msra.mxu0 0.0
  %585 = vmatpush.xpose.msra.mxu0 0.0
  %586 = vmatpush.xpose.msra.mxu0 0.0
  %587 = vmatpush.xpose.msra.mxu0 0.0
  %588 = vmatpush.xpose.msra.mxu0 0.0
  %589 = vmatpush.xpose.msra.mxu0 0.0
  %590 = vmatpush.xpose.msra.mxu0 0.0
  %591 = vmatpush.xpose.msra.mxu0 %v503
  %592 = vmatmul.f32.gmra.mxu0 %v484
  %v593 = vpop.f32.mrf.mxu0
  %v594 = vadd.f32 %v574, %v593
  %595 = vdwg.mxu0
  %596 = vmatpush.xpose.msra.mxu0 0.0
  %597 = vmatpush.xpose.msra.mxu0 0.0
  %598 = vmatpush.xpose.msra.mxu0 0.0
  %599 = vmatpush.xpose.msra.mxu0 0.0
  %600 = vmatpush.xpose.msra.mxu0 0.0
  %601 = vmatpush.xpose.msra.mxu0 0.0
  %602 = vmatpush.xpose.msra.mxu0 0.0
  %603 = vmatpush.xpose.msra.mxu0 0.0
  %604 = vmatpush.xpose.msra.mxu0 0.0
  %605 = vmatpush.xpose.msra.mxu0 0.0
  %606 = vmatpush.xpose.msra.mxu0 0.0
  %607 = vmatpush.xpose.msra.mxu0 0.0
  %608 = vmatpush.xpose.msra.mxu0 0.0
  %609 = vmatpush.xpose.msra.mxu0 0.0
  %610 = vmatpush.xpose.msra.mxu0 0.0
  %611 = vmatpush.xpose.msra.mxu0 %v504
  %612 = vmatmul.f32.gmra.mxu0 %v485
  %v613 = vpop.f32.mrf.mxu0
  %v614 = vadd.f32 %v594, %v613
  %615 = vdwg.mxu0
  %616 = vmatpush.xpose.msra.mxu0 0.0
  %617 = vmatpush.xpose.msra.mxu0 0.0
  %618 = vmatpush.xpose.msra.mxu0 0.0
  %619 = vmatpush.xpose.msra.mxu0 0.0
  %620 = vmatpush.xpose.msra.mxu0 0.0
  %621 = vmatpush.xpose.msra.mxu0 0.0
  %622 = vmatpush.xpose.msra.mxu0 0.0
  %623 = vmatpush.xpose.msra.mxu0 0.0
  %624 = vmatpush.xpose.msra.mxu0 0.0
  %625 = vmatpush.xpose.msra.mxu0 0.0
  %626 = vmatpush.xpose.msra.mxu0 0.0
  %627 = vmatpush.xpose.msra.mxu0 0.0
  %628 = vmatpush.xpose.msra.mxu0 0.0
  %629 = vmatpush.xpose.msra.mxu0 0.0
  %630 = vmatpush.xpose.msra.mxu0 0.0
  %631 = vmatpush.xpose.msra.mxu0 %v505
  %632 = vmatmul.f32.gmra.mxu0 %v486
  %v633 = vpop.f32.mrf.mxu0
  %v634 = vadd.f32 %v614, %v633
  %635 = vdwg.mxu0
  %636 = vmatpush.xpose.msra.mxu0 0.0
  %637 = vmatpush.xpose.msra.mxu0 0.0
  %638 = vmatpush.xpose.msra.mxu0 0.0
  %639 = vmatpush.xpose.msra.mxu0 0.0
  %640 = vmatpush.xpose.msra.mxu0 0.0
  %641 = vmatpush.xpose.msra.mxu0 0.0
  %642 = vmatpush.xpose.msra.mxu0 0.0
  %643 = vmatpush.xpose.msra.mxu0 0.0
  %644 = vmatpush.xpose.msra.mxu0 0.0
  %645 = vmatpush.xpose.msra.mxu0 0.0
  %646 = vmatpush.xpose.msra.mxu0 0.0
  %647 = vmatpush.xpose.msra.mxu0 0.0
  %648 = vmatpush.xpose.msra.mxu0 0.0
  %649 = vmatpush.xpose.msra.mxu0 0.0
  %650 = vmatpush.xpose.msra.mxu0 0.0
  %651 = vmatpush.xpose.msra.mxu0 %v506
  %652 = vmatmul.f32.gmra.mxu0 %v487
  %v653 = vpop.f32.mrf.mxu0
  %v654 = vadd.f32 %v634, %v653
  %655 = vdwg.mxu0
  %656 = vmatpush.xpose.msra.mxu0 0.0
  %657 = vmatpush.xpose.msra.mxu0 0.0
  %658 = vmatpush.xpose.msra.mxu0 0.0
  %659 = vmatpush.xpose.msra.mxu0 0.0
  %660 = vmatpush.xpose.msra.mxu0 0.0
  %661 = vmatpush.xpose.msra.mxu0 0.0
  %662 = vmatpush.xpose.msra.mxu0 0.0
  %663 = vmatpush.xpose.msra.mxu0 0.0
  %664 = vmatpush.xpose.msra.mxu0 0.0
  %665 = vmatpush.xpose.msra.mxu0 0.0
  %666 = vmatpush.xpose.msra.mxu0 0.0
  %667 = vmatpush.xpose.msra.mxu0 0.0
  %668 = vmatpush.xpose.msra.mxu0 0.0
  %669 = vmatpush.xpose.msra.mxu0 0.0
  %670 = vmatpush.xpose.msra.mxu0 0.0
  %671 = vmatpush.xpose.msra.mxu0 %v507
  %672 = vmatmul.f32.gmra.mxu0 %v488
  %v673 = vpop.f32.mrf.mxu0
  %v674 = vadd.f32 %v654, %v673
  %675 = vdwg.mxu0
  %v676 = vadd.f32 %v477, %v674
  %677 = vst.msk [vmem:[#allocation4] sm:$0x3] %vm274, %v676
  // Predicated region
  $region14: #{diff_loss.1} parent=0 // pred_check
    %p678 = pneg %p58
  $region15: #{diff_loss.1} parent=0 // pred_check_branch
    %680 = sbr.rel (%p678) target = $region17
  $region16: #{diff_loss.1} parent=0 // pred_region
    %v681 = vld [vmem:[#allocation2] sm:$0x3]
    %682 = vst.msk [vmem:[%s2] sm:$0x3] %vm274, %v681
    %v683 = vld [vmem:[#allocation3] sm:$0x3]
    %684 = vst.msk [vmem:[%s3] sm:$0x3] %vm274, %v683
    %v685 = vld [vmem:[#allocation4] sm:$0x3]
    %686 = vst.msk [vmem:[%s4] sm:$0x3] %vm274, %v685
  $region17: #{diff_loss.1} parent=0 // pred_fallthru
    _
  // Predicated region
  $region18: #{diff_loss.1} parent=0 // pred_check
    _
  $region19: #{diff_loss.1} parent=0 // pred_check_branch
    %688 = sbr.rel (0) target = $region21
  $region20: #{diff_loss.1} parent=0 // pred_region
    _
  $region21: #{diff_loss.1} parent=0 // pred_fallthru
    _
  // Predicated region
  $region22: #{diff_loss.1} parent=0 // pred_check
    _
  $region23: #{diff_loss.1} parent=0 // pred_check_branch
    %690 = sbr.rel (0) target = $region25
  $region24: #{diff_loss.1} parent=0 // pred_region
    _
  $region25: #{diff_loss.1} parent=0 // pred_fallthru
    _
  // Predicated region
  $region26: #{diff_loss.1} parent=0 // pred_check
    _
  $region27: #{diff_loss.1} parent=0 // pred_check_branch
    %692 = sbr.rel (0) target = $region29
  $region28: #{diff_loss.1} parent=0 // pred_region
    _
  $region29: #{diff_loss.1} parent=0 // pred_fallthru
    _
  // Predicated region
  $region30: #{diff_loss.1} parent=0 // pred_check
    _
  $region31: #{diff_loss.1} parent=0 // pred_check_branch
    %694 = sbr.rel (0) target = $region33
  $region32: #{diff_loss.1} parent=0 // pred_region
    _
  $region33: #{diff_loss.1} parent=0 // pred_fallthru
    _
  // Predicated region
  $region34: #{diff_loss.1} parent=0 // pred_check
    _
  $region35: #{diff_loss.1} parent=0 // pred_check_branch
    %696 = sbr.rel (0) target = $region37
  $region36: #{diff_loss.1} parent=0 // pred_region
    _
  $region37: #{diff_loss.1} parent=0 // pred_fallthru
    _
  // Predicated region
  $region38: #{diff_loss.1} parent=0 // pred_check
    _
  $region39: #{diff_loss.1} parent=0 // pred_check_branch
    %698 = sbr.rel (0) target = $region41
  $region40: #{diff_loss.1} parent=0 // pred_region
    _
  $region41: #{diff_loss.1} parent=0 // pred_fallthru
    _

</llo_original>
